<compile_context>
chip_gen: v5e
topology: v5e:2x2
jax: 0.10.0
libtpu: 0.0.40
codegen_flags: <defaults>
</compile_context>

<pallas_src>
import functools

import jax
import jax.numpy as jnp
from jax import lax
from jax.experimental import pallas as pl
from jax.experimental.pallas import tpu as pltpu

DIM_INPUT = 4
D_FC1 = 64
H = 16
G = 4 * H
D_OUT = 2

_VMEM_LIMIT = 32 * 1024 * 1024  # explicit scoped budget; safe on v5e/v6e/v7x


def _round_up(x, m):
    return ((x + m - 1) // m) * m


# ----------------------------- Pallas kernels ------------------------------

def proj_kernel(x_ref, w1_ref, b1_ref, wih_ref, bias_ref, o_ref):
    """Batched pre-pass over (T_pad*B) time-major rows:
       xproj = sigmoid(x @ w1 + b1) @ wih + (b_ih + b_hh), gate order [i,f,o,g]."""
    x1 = jax.nn.sigmoid(
        jnp.dot(x_ref[...], w1_ref[...], preferred_element_type=jnp.float32)
        + b1_ref[...])
    o_ref[...] = (jnp.dot(x1, wih_ref[...], preferred_element_type=jnp.float32)
                  + bias_ref[...])


def recurrence_kernel(xproj_ref, last_ref, whh_ref, y_ref,
                      h_sc, c_sc, y_sc, *, t_tile):
    """Serial LSTM recurrence over one chunk of t_tile timesteps.

    xproj_ref: (t_tile, B, 4H) precomputed input projection (+ folded biases)
    last_ref : (B, 1) int32, lengths - 1 (loop invariant)
    whh_ref  : (H, 4H) recurrent weights, gate order [i, f, o, g]
    y_ref    : (B, H) output block (resident); written only on the last chunk
    h_sc,c_sc,y_sc: (B, H) f32 scratch carrying state across grid chunks
    """
    chunk = pl.program_id(0)

    @pl.when(chunk == 0)
    def _init():
        h_sc[...] = jnp.zeros_like(h_sc)
        c_sc[...] = jnp.zeros_like(c_sc)
        y_sc[...] = jnp.zeros_like(y_sc)

    whh = whh_ref[...]            # (H, 4H), hoisted out of the step
    last_t = last_ref[...]        # (B, 1),  hoisted
    t_base = chunk * t_tile

    def step(tt, carry):
        h, c, y = carry
        # Only the true recurrence sits on the serial path: h @ whh.
        gates = xproj_ref[tt] + jnp.dot(h, whh, preferred_element_type=jnp.float32)
        sig = jax.nn.sigmoid(gates[:, :3 * H])          # i, f, o in one activation
        i_g = sig[:, 0 * H:1 * H]
        f_g = sig[:, 1 * H:2 * H]
        o_g = sig[:, 2 * H:3 * H]
        g_g = jnp.tanh(gates[:, 3 * H:])
        c_new = f_g * c + i_g * g_g
        h_new = o_g * jnp.tanh(c_new)
        y_new = jnp.where(last_t == (t_base + tt), h_new, y)
        return h_new, c_new, y_new

    h, c, y = lax.fori_loop(0, t_tile, step,
                            (h_sc[...], c_sc[...], y_sc[...]),
                            unroll=8)
    h_sc[...] = h
    c_sc[...] = c
    y_sc[...] = y

    @pl.when(chunk == pl.num_programs(0) - 1)
    def _fin():
        y_ref[...] = y_sc[...]


# ------------------------------ host wrappers -------------------------------

def make_params(key, dim_input):
    """Parameters in the PyTorch layout (LSTM gate order i, f, g, o)."""
    ks = jax.random.split(key, 8)

    def unif(k, shape, fan_in):
        bound = 1.0 / jnp.sqrt(jnp.float32(fan_in))
        return jax.random.uniform(k, shape, jnp.float32, -bound, bound)

    w1 = unif(ks[0], (D_FC1, dim_input), dim_input)   # fc1
    b1 = unif(ks[1], (D_FC1,), dim_input)
    w_ih = unif(ks[2], (G, D_FC1), H)                 # LSTM weight_ih_l0
    b_ih = unif(ks[3], (G,), H)
    w_hh = unif(ks[4], (G, H), H)                     # LSTM weight_hh_l0
    b_hh = unif(ks[5], (G,), H)
    w2 = unif(ks[6], (D_OUT, H), H)                   # fc2
    b2 = unif(ks[7], (D_OUT,), H)
    return (w1, b1, w_ih, b_ih, w_hh, b_hh, w2, b2)


def _prepare_kernel_params(params):
    """Wrapper-side layout plumbing: transpose, reorder gates to [i, f, o, g],
    fold the two LSTM biases into one."""
    w1, b1, w_ih, b_ih, w_hh, b_hh, w2, b2 = params
    perm = jnp.concatenate([
        jnp.arange(0 * H, 1 * H),   # i
        jnp.arange(1 * H, 2 * H),   # f
        jnp.arange(3 * H, 4 * H),   # o
        jnp.arange(2 * H, 3 * H),   # g
    ])
    w1_t = w1.T                                   # (D, 64)
    b1_r = b1.reshape(1, D_FC1)                   # (1, 64)
    wih_t = w_ih[perm].T                          # (64, 4H)
    whh_t = w_hh[perm].T                          # (H, 4H)
    bias = (b_ih + b_hh)[perm].reshape(1, G)      # (1, 4H)
    w2_t = w2.T                                   # (H, 2)
    b2_r = b2.reshape(1, D_OUT)                   # (1, 2)
    return w1_t, b1_r, wih_t, whh_t, bias, w2_t, b2_r


def lstm_forward(seqs, lengths, params, *, t_tile_max=128, r_tile_max=4096):
    """seqs: (B, T, D) float32, lengths: (B,) int32 -> (B, 2) float32."""
    B, T, D = seqs.shape
    w1_t, b1_r, wih_t, whh_t, bias, w2_t, b2_r = _prepare_kernel_params(params)
    vmem = pl.BlockSpec(memory_space=pltpu.MemorySpace.VMEM)

    # ---- chunking: t_tile a multiple of 8 so all row blocks stay 8-aligned ----
    t_tile = min(_round_up(t_tile_max, 8), _round_up(T, 8))
    T_pad = _round_up(T, t_tile)
    n_chunks = T_pad // t_tile
    rows = T_pad * B
    rows_per_chunk = t_tile * B

    # Time-major rows, zero-padded to T_pad steps *before* the proj pass, so
    # the proj output is already in the exact layout/padding the recurrence
    # consumes (the reshape below is a free row-major bitcast; no slice/pad
    # HBM copy between the two pallas_calls).  Padded steps never match
    # last_t, so y is unaffected; the evolving h/c scratch is discarded.
    x_tm = jnp.transpose(seqs, (1, 0, 2))                  # (T, B, D)
    if T_pad != T:
        x_tm = jnp.pad(x_tm, ((0, T_pad - T), (0, 0), (0, 0)))
    x_rows = x_tm.reshape(rows, D)

    # ---- pre-pass: fc1 + sigmoid + input-gate projection over all rows ----
    # proj tile = largest multiple of the recurrence chunk that divides the
    # padded row count and stays under r_tile_max (amortises per-step overhead).
    c_max = max(1, min(r_tile_max // rows_per_chunk, n_chunks))
    c_div = 1
    for cand in range(c_max, 0, -1):
        if n_chunks % cand == 0:
            c_div = cand
            break
    r_tile = c_div * rows_per_chunk

    xproj = pl.pallas_call(
        proj_kernel,
        out_shape=jax.ShapeDtypeStruct((rows, G), jnp.float32),
        grid=(rows // r_tile,),
        in_specs=[pl.BlockSpec((r_tile, D), lambda i: (i, 0)),
                  vmem, vmem, vmem, vmem],
        out_specs=pl.BlockSpec((r_tile, G), lambda i: (i, 0)),
        compiler_params=pltpu.CompilerParams(
            dimension_semantics=("parallel",),
            vmem_limit_bytes=_VMEM_LIMIT),
    )(x_rows, w1_t, b1_r, wih_t, bias)

    xproj_tbg = xproj.reshape(T_pad, B, G)        # free bitcast, no data movement
    last = (lengths.astype(jnp.int32) - 1).reshape(B, 1)

    # ---- serial recurrence, gridded over T chunks (pipelined xproj DMA) ----
    y = pl.pallas_call(
        functools.partial(recurrence_kernel, t_tile=t_tile),
        out_shape=jax.ShapeDtypeStruct((B, H), jnp.float32),
        grid=(n_chunks,),
        in_specs=[pl.BlockSpec((t_tile, B, G), lambda t: (t, 0, 0)),
                  vmem, vmem],
        out_specs=pl.BlockSpec((B, H), lambda t: (0, 0)),
        scratch_shapes=[pltpu.VMEM((B, H), jnp.float32),
                        pltpu.VMEM((B, H), jnp.float32),
                        pltpu.VMEM((B, H), jnp.float32)],
        compiler_params=pltpu.CompilerParams(
            dimension_semantics=("arbitrary",),
            vmem_limit_bytes=_VMEM_LIMIT),
    )(xproj_tbg, last, whh_t)

    # fc2 (16x2) stays lane-dense in the wrapper (avoids a masked (B,2) store
    # and a wasted MXU call inside the kernel).
    return y @ w2_t + b2_r


def reference_forward(seqs, lengths, params):
    """Pure-JAX reference mirroring the PyTorch forward (PyTorch param layout)."""
    w1, b1, w_ih, b_ih, w_hh, b_hh, w2, b2 = params
    B, T, D = seqs.shape
    x = jax.nn.sigmoid(seqs @ w1.T + b1)               # (B, T, 64)

    def step(carry, x_t):
        h, c = carry
        gates = x_t @ w_ih.T + b_ih + h @ w_hh.T + b_hh
        i_g = jax.nn.sigmoid(gates[:, 0 * H:1 * H])
        f_g = jax.nn.sigmoid(gates[:, 1 * H:2 * H])
        g_g = jnp.tanh(gates[:, 2 * H:3 * H])
        o_g = jax.nn.sigmoid(gates[:, 3 * H:4 * H])
        c = f_g * c + i_g * g_g
        h = o_g * jnp.tanh(c)
        return (h, c), h

    zeros = jnp.zeros((B, H), jnp.float32)
    _, hs = lax.scan(step, (zeros, zeros), jnp.transpose(x, (1, 0, 2)))
    hs = jnp.transpose(hs, (1, 0, 2))                  # (B, T, H)
    y = hs[jnp.arange(B), lengths - 1, :]              # gather last valid step
    return y @ w2.T + b2


if __name__ == "__main__":
    key = jax.random.PRNGKey(0)
    k_param, k_data, k_data2 = jax.random.split(key, 3)

    params = make_params(k_param, DIM_INPUT)

    # ---- primary small case (matches the module's intended shapes) ----
    B, T = 2, 8
    seqs = jax.random.normal(k_data, (B, T, DIM_INPUT), jnp.float32)
    lengths = jnp.array([8, 5], dtype=jnp.int32)       # sorted decreasing

    out = jax.block_until_ready(lstm_forward(seqs, lengths, params))
    ref = jax.block_until_ready(reference_forward(seqs, lengths, params))
    assert out.shape == (B, D_OUT)
    assert jnp.allclose(out, ref, atol=1e-5, rtol=1e-5), (out, ref)

    # ---- second case: forces multiple recurrence chunks + time padding to
    # exercise the cross-chunk h/c/y carry and the last-chunk-only y store ----
    T2 = 21
    seqs2 = jax.random.normal(k_data2, (B, T2, DIM_INPUT), jnp.float32)
    lengths2 = jnp.array([21, 13], dtype=jnp.int32)
    out2 = jax.block_until_ready(
        lstm_forward(seqs2, lengths2, params, t_tile_max=8))
    ref2 = jax.block_until_ready(reference_forward(seqs2, lengths2, params))
    assert jnp.allclose(out2, ref2, atol=1e-5, rtol=1e-5), (out2, ref2)

    print("KERNEL_OK")
</pallas_src>

<mosaic_0001>
module attributes {stable_mosaic.version = 11 : i64} {
  func.func @proj_kernel(%arg0: i32, %arg1: memref<16x4xf32, #tpu.memory_space<vmem>>, %arg2: memref<4x64xf32, #tpu.memory_space<vmem>>, %arg3: memref<1x64xf32, #tpu.memory_space<vmem>>, %arg4: memref<64x64xf32, #tpu.memory_space<vmem>>, %arg5: memref<1x64xf32, #tpu.memory_space<vmem>>, %arg6: memref<16x64xf32, #tpu.memory_space<vmem>>) attributes {dimension_semantics = [#tpu.dimension_semantics<parallel>], iteration_bounds = array<i64: 1>, scalar_prefetch = 0 : i64, scratch_operands = 0 : i64, tpu.core_type = #tpu.core_type<tc>, window_params = [{transform_indices = @transform_0, window_bounds = array<i64: 16, 4>}, {pipeline_mode = #tpu.pipeline_mode<synchronous>, transform_indices = @transform_1, window_bounds = array<i64: 4, 64>}, {pipeline_mode = #tpu.pipeline_mode<synchronous>, transform_indices = @transform_2, window_bounds = array<i64: 1, 64>}, {pipeline_mode = #tpu.pipeline_mode<synchronous>, transform_indices = @transform_3, window_bounds = array<i64: 64, 64>}, {pipeline_mode = #tpu.pipeline_mode<synchronous>, transform_indices = @transform_4, window_bounds = array<i64: 1, 64>}, {transform_indices = @transform_5, window_bounds = array<i64: 16, 64>}]} {
    %c0 = arith.constant 0 : index
    %c0_0 = arith.constant 0 : index
    %0 = vector.load %arg1[%c0, %c0_0] : memref<16x4xf32, #tpu.memory_space<vmem>>, vector<16x4xf32>
    %c0_1 = arith.constant 0 : index
    %c0_2 = arith.constant 0 : index
    %1 = vector.load %arg2[%c0_1, %c0_2] : memref<4x64xf32, #tpu.memory_space<vmem>>, vector<4x64xf32>
    %cst = arith.constant dense<0.000000e+00> : vector<16x64xf32>
    %2 = tpu.matmul %0, %1, %cst {dimension_numbers = #tpu.dot_dimension_numbers<[1], [0], [0], [1], [0, 0, 1, 1], [], []>} : vector<16x4xf32>, vector<4x64xf32>, vector<16x64xf32> -> vector<16x64xf32>
    %c0_3 = arith.constant 0 : index
    %c0_4 = arith.constant 0 : index
    %3 = vector.load %arg3[%c0_3, %c0_4] : memref<1x64xf32, #tpu.memory_space<vmem>>, vector<1x64xf32>
    %4 = vector.broadcast %3 : vector<1x64xf32> to vector<16x64xf32>
    %5 = arith.addf %2, %4 : vector<16x64xf32>
    %6 = arith.negf %5 : vector<16x64xf32>
    %7 = math.exp %6 : vector<16x64xf32>
    %cst_5 = arith.constant 1.000000e+00 : f32
    %8 = vector.broadcast %cst_5 : f32 to vector<16x64xf32>
    %9 = arith.addf %8, %7 : vector<16x64xf32>
    %10 = arith.divf %8, %9 : vector<16x64xf32>
    %c0_6 = arith.constant 0 : index
    %c0_7 = arith.constant 0 : index
    %11 = vector.load %arg4[%c0_6, %c0_7] : memref<64x64xf32, #tpu.memory_space<vmem>>, vector<64x64xf32>
    %cst_8 = arith.constant dense<0.000000e+00> : vector<16x64xf32>
    %12 = tpu.matmul %10, %11, %cst_8 {dimension_numbers = #tpu.dot_dimension_numbers<[1], [0], [0], [1], [0, 0, 1, 1], [], []>} : vector<16x64xf32>, vector<64x64xf32>, vector<16x64xf32> -> vector<16x64xf32>
    %c0_9 = arith.constant 0 : index
    %c0_10 = arith.constant 0 : index
    %13 = vector.load %arg5[%c0_9, %c0_10] : memref<1x64xf32, #tpu.memory_space<vmem>>, vector<1x64xf32>
    %14 = vector.broadcast %13 : vector<1x64xf32> to vector<16x64xf32>
    %15 = arith.addf %12, %14 : vector<16x64xf32>
    %c0_11 = arith.constant 0 : index
    %c0_12 = arith.constant 0 : index
    %16 = vector.load %arg6[%c0_11, %c0_12] : memref<16x64xf32, #tpu.memory_space<vmem>>, vector<16x64xf32>
    tpu.vector_store %arg6[%c0_11, %c0_12], %15 {strides = array<i32>} : memref<16x64xf32, #tpu.memory_space<vmem>>, vector<16x64xf32>,
    return
  }
  func.func @transform_0(%arg0: i32) -> (i32, i32) {
    %c0_i32 = arith.constant 0 : i32
    %c0_i32_0 = arith.constant 0 : i32
    return %arg0, %c0_i32 : i32, i32
  }
  func.func @transform_1(%arg0: i32) -> (i32, i32) {
    %c0_i32 = arith.constant 0 : i32
    %c0_i32_0 = arith.constant 0 : i32
    %c0_i32_1 = arith.constant 0 : i32
    return %c0_i32, %c0_i32_0 : i32, i32
  }
  func.func @transform_2(%arg0: i32) -> (i32, i32) {
    %c0_i32 = arith.constant 0 : i32
    %c0_i32_0 = arith.constant 0 : i32
    %c0_i32_1 = arith.constant 0 : i32
    return %c0_i32, %c0_i32_0 : i32, i32
  }
  func.func @transform_3(%arg0: i32) -> (i32, i32) {
    %c0_i32 = arith.constant 0 : i32
    %c0_i32_0 = arith.constant 0 : i32
    %c0_i32_1 = arith.constant 0 : i32
    return %c0_i32, %c0_i32_0 : i32, i32
  }
  func.func @transform_4(%arg0: i32) -> (i32, i32) {
    %c0_i32 = arith.constant 0 : i32
    %c0_i32_0 = arith.constant 0 : i32
    %c0_i32_1 = arith.constant 0 : i32
    return %c0_i32, %c0_i32_0 : i32, i32
  }
  func.func @transform_5(%arg0: i32) -> (i32, i32) {
    %c0_i32 = arith.constant 0 : i32
    %c0_i32_0 = arith.constant 0 : i32
    return %arg0, %c0_i32 : i32, i32
  }
}

</mosaic_0001>

<llo_original>
// kernel: tpu_custom_call.1
$region0: #{tpu_custom_call.1}
  #allocation0 [shape = 'u32[]', space=smem, size = 0x4, offset = 0x4, fixed_abs, tag = 'smem constant byte address 0x4 - core index']
  #allocation1 [shape = 'u32[72,128]{1,0:T(1,128)}', space=vmem, size = 0x9000, scoped, tag = 'internal scratch']
  %s0 = inlined_call_operand.vmem [shape: f32[16,4], index: 0, kind: input, shape index: {}]
  %s1 = inlined_call_operand.vmem [shape: f32[4,64], index: 1, kind: input, shape index: {}]
  %s2 = inlined_call_operand.vmem [shape: f32[1,64], index: 2, kind: input, shape index: {}]
  %s3 = inlined_call_operand.hbm [shape: f32[64,64], index: 3, kind: input, shape index: {}]
  %s4 = inlined_call_operand.vmem [shape: f32[1,64], index: 4, kind: input, shape index: {}]
  %s5 = inlined_call_operand.hbm [shape: f32[16,64], index: 5, kind: output, shape index: {}]
  %s6 = sld [smem:[#allocation0]]
  $region34: #{tpu_custom_call.1} parent=0
    _
  %s8 = ssub.s32 1, %s6
  %s9 = scalar_select 0, %s8, %s6
  $region1: #{tpu_custom_call.1} parent=0
    #allocation2 [shape = 'u8[32768]{0}', space=vmem, size = 0x8000, scoped, tag = 'input window, operand 3, single buffered']
    #allocation3 [shape = 's32[1]{0}', space=sflag, size = 0x4, scoped, tag = 'scoped memory for tpu_custom_call.1']
    #allocation4 [shape = 's32[1]{0}', space=sflag, size = 0x4, scoped, tag = 'scoped memory for tpu_custom_call.1']
    #allocation5 [shape = 'u8[8192]{0}', space=vmem, size = 0x2000, scoped, tag = 'output window, operand 0, single buffered']
    %10 = vsyncpa [#allocation3], 0
    %11 = vsyncpa [#allocation4], 0
    // Predicated region
    $region2: #{tpu_custom_call.1} parent=1 // pred_check
      _
    $region3: #{tpu_custom_call.1} parent=1 // pred_check_branch
      %13 = sbr.rel (0) target = $region5
    $region4: #{tpu_custom_call.1} parent=1 // pred_region
      _
    $region5: #{tpu_custom_call.1} parent=1 // pred_fallthru
      _
    // Predicated region
    $region6: #{tpu_custom_call.1} parent=1 // pred_check
      _
    $region7: #{tpu_custom_call.1} parent=1 // pred_check_branch
      %15 = sbr.rel (0) target = $region9
    $region8: #{tpu_custom_call.1} parent=1 // pred_region
      _
    $region9: #{tpu_custom_call.1} parent=1 // pred_fallthru
      _
    // Predicated region
    $region10: #{tpu_custom_call.1} parent=1 // pred_check
      _
    $region11: #{tpu_custom_call.1} parent=1 // pred_check_branch
      %17 = sbr.rel (0) target = $region13
    $region12: #{tpu_custom_call.1} parent=1 // pred_region
      _
    $region13: #{tpu_custom_call.1} parent=1 // pred_fallthru
      _
    // Predicated region
    $region14: #{tpu_custom_call.1} parent=1 // pred_check
      _
    $region15: #{tpu_custom_call.1} parent=1 // pred_check_branch
      %19 = sbr.rel (0) target = $region17
    $region16: #{tpu_custom_call.1} parent=1 // pred_region
      %21 = vsyncadd [#allocation3], 0
      %s22 = sshll.u32 %s3, 4
      %s23 = int_to_ptr.hbm [resolvable:$true] %s22
      %s24 = sshll.u32 [#allocation2], 4
      %s25 = int_to_ptr.vmem [resolvable:$true] %s24
      %30 = dma.hbm_to_vmem [thread:$0]  %s23, 1024, %s25, [#allocation3], 128, 128, 8
    $region17: #{tpu_custom_call.1} parent=1 // pred_fallthru
      _
    // Predicated region
    $region18: #{tpu_custom_call.1} parent=1 // pred_check
      _
    $region19: #{tpu_custom_call.1} parent=1 // pred_check_branch
      %32 = sbr.rel (0) target = $region21
    $region20: #{tpu_custom_call.1} parent=1 // pred_region
      _
    $region21: #{tpu_custom_call.1} parent=1 // pred_fallthru
      _
    // Predicated region
    $region22: #{tpu_custom_call.1} parent=1 // pred_check
      _
    $region23: #{tpu_custom_call.1} parent=1 // pred_check_branch
      %34 = sbr.rel (0) target = $region25
    $region24: #{tpu_custom_call.1} parent=1 // pred_region
      %36 = dma.done [#allocation3], 1024
    $region25: #{tpu_custom_call.1} parent=1 // pred_fallthru
      _
    %v37 = vld [vmem:[%s0] sm:$0xff]
    %v38 = vld [vmem:[%s0 + $0x8] sm:$0xff]
    %v39 = vld [vmem:[%s1] sm:$0xf]
    %v40 = vld [vmem:[%s2] sm:$0x1]
    %v42 = vperm.slane %v40, 0
    %vm44 = vcmask 31744
    %v46 = vsel %vm44, %v37, 0
    %v49 = vsel %vm44, %v38, 0
    %vm51 = vcmask 1043456
    %v53 = vsel %vm51, %v39, 0
    %55 = vmatpush.msra.mxu0 0.0
    %56 = vmatpush.msra.mxu0 0.0
    %57 = vmatpush.msra.mxu0 0.0
    %58 = vmatpush.msra.mxu0 0.0
    %59 = vmatpush.msra.mxu0 0.0
    %60 = vmatpush.msra.mxu0 0.0
    %61 = vmatpush.msra.mxu0 0.0
    %62 = vmatpush.msra.mxu0 0.0
    %63 = vmatpush.msra.mxu0 0.0
    %64 = vmatpush.msra.mxu0 0.0
    %65 = vmatpush.msra.mxu0 0.0
    %66 = vmatpush.msra.mxu0 0.0
    %67 = vmatpush.msra.mxu0 0.0
    %68 = vmatpush.msra.mxu0 0.0
    %69 = vmatpush.msra.mxu0 0.0
    %70 = vmatpush.msra.mxu0 %v53
    %71 = vmatmul.f32.gmra.mxu0 %v46
    %v72 = vpop.f32.mrf.mxu0
    %v73 = vadd.f32 %v42, %v72
    %74 = vmatmul.f32.gmra.mxu0 %v49
    %v75 = vpop.f32.mrf.mxu0
    %v76 = vadd.f32 %v42, %v75
    %77 = vdwg.mxu0
    %v78 = vxor.u32 %v73, 2147483648
    %v79 = vxor.u32 %v76, 2147483648
    %v80 = vmul.f32 %v78, 1.442695
    %v81 = vpow.pop %v80
    %v82 = vmul.f32 %v79, 1.442695
    %v83 = vpow.pop %v82
    %v84 = vadd.f32 %v81, 1.0
    %v85 = vadd.f32 %v83, 1.0
    %v86 = vrcp.pop %v84
    %v87 = vmul.f32 %v84, %v86
    %v88 = vsub.f32 1.0, %v87
    %v89 = vmul.f32 %v86, %v88
    %v90 = vadd.f32 %v86, %v89
    %vm91 = vweird.f32 %v84
    %vm92 = vweird.f32 %v86
    %vm93 = vmor %vm91, %vm92
    %v94 = vsel %vm93, %v86, %v90
    %v95 = vand.u32 2147483647, %v84
    %vm96 = vcmp.eq.f32.partialorder %v95, 8.507059e+37
    %v97 = vand.u32 %v84, 2147483648
    %v98 = vor.u32 1.1754944e-38, %v97
    %v99 = vsel %vm96, %v98, %v94
    %v100 = vmul.f32 1.0, %v99
    %v101 = vrcp.pop %v85
    %v102 = vmul.f32 %v85, %v101
    %v103 = vsub.f32 1.0, %v102
    %v104 = vmul.f32 %v101, %v103
    %v105 = vadd.f32 %v101, %v104
    %vm106 = vweird.f32 %v85
    %vm107 = vweird.f32 %v101
    %vm108 = vmor %vm106, %vm107
    %v109 = vsel %vm108, %v101, %v105
    %v110 = vand.u32 2147483647, %v85
    %vm111 = vcmp.eq.f32.partialorder %v110, 8.507059e+37
    %v112 = vand.u32 %v85, 2147483648
    %v113 = vor.u32 1.1754944e-38, %v112
    %v114 = vsel %vm111, %v113, %v109
    %v115 = vmul.f32 1.0, %v114
    %v116 = vld [vmem:[#allocation2] sm:$0xff]
    %v117 = vld [vmem:[#allocation2 + $0x8] sm:$0xff]
    %v118 = vld [vmem:[#allocation2 + $0x10] sm:$0xff]
    %v119 = vld [vmem:[#allocation2 + $0x18] sm:$0xff]
    %v120 = vld [vmem:[#allocation2 + $0x20] sm:$0xff]
    %v121 = vld [vmem:[#allocation2 + $0x28] sm:$0xff]
    %v122 = vld [vmem:[#allocation2 + $0x30] sm:$0xff]
    %v123 = vld [vmem:[#allocation2 + $0x38] sm:$0xff]
    %v124 = vld [vmem:[%s4] sm:$0x1]
    %v126 = vperm.slane %v124, 0
    %vm128 = vcmask 523264
    %v130 = vsel %vm128, %v100, 0
    %v133 = vsel %vm128, %v115, 0
    %135 = vmatpush.msra.mxu0 0.0
    %136 = vmatpush.msra.mxu0 0.0
    %137 = vmatpush.msra.mxu0 0.0
    %138 = vmatpush.msra.mxu0 0.0
    %139 = vmatpush.msra.mxu0 0.0
    %140 = vmatpush.msra.mxu0 0.0
    %141 = vmatpush.msra.mxu0 0.0
    %142 = vmatpush.msra.mxu0 0.0
    %143 = vmatpush.msra.mxu0 %v123
    %144 = vmatpush.msra.mxu0 %v122
    %145 = vmatpush.msra.mxu0 %v121
    %146 = vmatpush.msra.mxu0 %v120
    %147 = vmatpush.msra.mxu0 %v119
    %148 = vmatpush.msra.mxu0 %v118
    %149 = vmatpush.msra.mxu0 %v117
    %150 = vmatpush.msra.mxu0 %v116
    %151 = vmatmul.f32.gmra.mxu0 %v130
    %v152 = vpop.f32.mrf.mxu0
    %v153 = vadd.f32 %v126, %v152
    %154 = vmatmul.f32.gmra.mxu0 %v133
    %v155 = vpop.f32.mrf.mxu0
    %v156 = vadd.f32 %v126, %v155
    %157 = vdwg.mxu0
    %158 = vst.msk [vmem:[#allocation5] sm:$0xff] %vm128, %v153
    %159 = vst.msk [vmem:[#allocation5 + $0x8] sm:$0xff] %vm128, %v156
    // Predicated region
    $region26: #{tpu_custom_call.1} parent=1 // pred_check
      _
    $region27: #{tpu_custom_call.1} parent=1 // pred_check_branch
      %161 = sbr.rel (0) target = $region29
    $region28: #{tpu_custom_call.1} parent=1 // pred_region
      %163 = vsyncadd [#allocation4], 0
      %s164 = sshll.u32 [#allocation5], 4
      %s165 = int_to_ptr.vmem [resolvable:$true] %s164
      %s166 = sshll.u32 %s5, 4
      %s167 = int_to_ptr.hbm [resolvable:$true] %s166
      %172 = dma.vmem_to_hbm [thread:$0]  %s165, 256, %s167, [#allocation4], 128, 128, 8
    $region29: #{tpu_custom_call.1} parent=1 // pred_fallthru
      _
    // Predicated region
    $region30: #{tpu_custom_call.1} parent=1 // pred_check
      _
    $region31: #{tpu_custom_call.1} parent=1 // pred_check_branch
      %174 = sbr.rel (0) target = $region33
    $region32: #{tpu_custom_call.1} parent=1 // pred_region
      %176 = dma.done [#allocation4], 256
    $region33: #{tpu_custom_call.1} parent=1 // pred_fallthru
      _
    %177 = vsyncpa [#allocation3], 1
    %178 = vsyncpa [#allocation4], 1

</llo_original>
